<compile_context>
chip_gen: v7x
topology: tpu7x:2x2x1
jax: 0.10.0
libtpu: 0.0.40
codegen_flags: <defaults>
</compile_context>

<pallas_src>
import numpy as np

import jax
import jax.numpy as jnp
from jax import lax
from jax.experimental import pallas as pl
from jax.experimental.pallas import tpu as pltpu


def _make_kernel(matmul_dtype):
    def kernel(x_ref, scale_ref, shift_ref, m_ref, bias_ref, out_ref):
        # x_ref:     (B, C_in*L)        B samples; (channel, position) folded on lanes
        # scale_ref: (1, C_in*L)        BN scale per (channel, position)
        # shift_ref: (1, C_in*L)        BN shift per (channel, position)
        # m_ref:     (C_in*L, C_out*L)  banded conv-as-matmul matrix (taps + zero pad)
        # bias_ref:  (1, C_out*L)       conv bias per (out-channel, position)
        # out_ref:   (B, C_out*L)
        # BatchNorm (eval, folded) + ReLU.  Dropout(p=0) == identity.
        h = jnp.maximum(x_ref[...] * scale_ref[...] + shift_ref[...], 0.0)
        # Whole conv (all taps, all channels, zero padding) as one MXU matmul.
        acc = jnp.dot(h.astype(matmul_dtype), m_ref[...],
                      preferred_element_type=jnp.float32)
        out_ref[...] = (acc + bias_ref[...]).astype(out_ref.dtype)

    return kernel


def unit_conv(x, gamma, beta, running_mean, running_var, weight, bias,
              eps=1e-5, matmul_dtype=jnp.float32):
    """Forward pass of UnitConv (eval-mode BatchNorm, Dropout p=0, stride=1).

    x:      (N, C_in, L)  float32
    gamma/beta/running_mean/running_var: (C_in,)
    weight: (C_out, C_in, K)
    bias:   (C_out,)
    returns (N, C_out, L)
    """
    N, C_in, L = x.shape
    C_out, C_in_w, K = weight.shape
    assert C_in_w == C_in
    # PyTorch Conv1d with padding=(K-1)//2 only preserves length for odd K.
    assert K % 2 == 1, "UnitConv kernel assumes an odd kernel_size"
    pad = (K - 1) // 2

    CL_in = C_in * L
    CL_out = C_out * L

    m_bytes = CL_in * CL_out * np.dtype(matmul_dtype).itemsize
    if m_bytes > 6 * 1024 * 1024:
        # TODO(synk): long sequences need an L-tiled kernel with a (K-1)-lane halo;
        # the dense conv-as-matmul matrix would not fit VMEM comfortably here.
        raise NotImplementedError(
            f"unit_conv: (C_in*L, C_out*L) matrix of {m_bytes} bytes exceeds the "
            "VMEM budget; L-tiled path not implemented")

    # ---- host-side parameter folding (eval-mode BatchNorm) ----
    inv_std = 1.0 / jnp.sqrt(running_var.astype(jnp.float32) + eps)
    ch_scale = (gamma.astype(jnp.float32) * inv_std)                    # (C_in,)
    ch_shift = (beta.astype(jnp.float32)
                - running_mean.astype(jnp.float32) * ch_scale)          # (C_in,)
    scale_row = jnp.repeat(ch_scale, L).reshape(1, CL_in)               # lane c*L+l
    shift_row = jnp.repeat(ch_shift, L).reshape(1, CL_in)
    bias_row = jnp.repeat(bias.astype(jnp.float32), L).reshape(1, CL_out)

    # Conv-as-matmul matrix:
    #   M[c*L + ls, o*L + lo] = W[o, c, ls - lo + pad]  if 0 <= ls - lo + pad < K
    #                         = 0                        otherwise (zero padding)
    ls = jnp.arange(L, dtype=jnp.int32)[:, None]          # source position
    lo = jnp.arange(L, dtype=jnp.int32)[None, :]          # output position
    kidx = ls - lo + pad                                  # (L, L)
    valid = (kidx >= 0) & (kidx < K)
    kclip = jnp.clip(kidx, 0, K - 1)
    w_perm = jnp.transpose(weight.astype(jnp.float32), (1, 0, 2))       # (C_in, C_out, K)
    m4 = jnp.where(valid[None, None], w_perm[:, :, kclip], 0.0)         # (C_in, C_out, L, L)
    m = (jnp.transpose(m4, (0, 2, 1, 3))                                # (C_in, L, C_out, L)
           .reshape(CL_in, CL_out)
           .astype(matmul_dtype))

    # ---- batch block size: large sublane tiles, VMEM-budgeted, no batch padding ----
    bytes_per_row = 4 * (CL_in + CL_out)       # f32 x-row + out-row per sample
    VMEM_IO_BUDGET = 8 * 1024 * 1024           # x + out blocks, double-buffered
    if N <= 8:
        # Tiny batches: one full-batch block (full-dim block shapes keep the (8,128)
        # constraints trivially satisfied and avoid computing padded garbage rows).
        B = N
    else:
        b_vmem = max(8, (VMEM_IO_BUDGET // (2 * bytes_per_row)) // 8 * 8)
        b_half = max(8, (N // 2) // 8 * 8)     # keep G >= 2 (v7x megacore split)
        B = min(2048, b_vmem, b_half)
    G = -(-N // B)                             # ragged last block handled by Pallas

    # Free (bitcast) row-major view; no transpose / pad of x in HBM.
    x2 = x.reshape(N, CL_in)

    kernel = _make_kernel(matmul_dtype)

    cost = pl.CostEstimate(
        flops=2 * N * CL_in * CL_out + 3 * N * CL_in,
        transcendentals=0,
        bytes_accessed=4 * N * (CL_in + CL_out) + m_bytes
        + 4 * (2 * CL_in + CL_out),
    )

    out2 = pl.pallas_call(
        kernel,
        out_shape=jax.ShapeDtypeStruct((N, CL_out), jnp.float32),
        grid=(G,),
        in_specs=[
            pl.BlockSpec((B, CL_in), lambda n: (n, 0)),
            pl.BlockSpec((1, CL_in), lambda n: (0, 0)),
            pl.BlockSpec((1, CL_in), lambda n: (0, 0)),
            pl.BlockSpec((CL_in, CL_out), lambda n: (0, 0)),
            pl.BlockSpec((1, CL_out), lambda n: (0, 0)),
        ],
        out_specs=pl.BlockSpec((B, CL_out), lambda n: (n, 0)),
        compiler_params=pltpu.CompilerParams(
            # sample-group axis is embarrassingly parallel (megacore / 2-TC split)
            dimension_semantics=("parallel",),
            vmem_limit_bytes=32 * 1024 * 1024,
        ),
        cost_estimate=cost,
    )(x2, scale_row, shift_row, m, bias_row)

    # Free (bitcast) reshape back to (N, C_out, L).
    return out2.reshape(N, C_out, L)


def _reference(x, gamma, beta, running_mean, running_var, weight, bias, eps=1e-5):
    """Pure-JAX reference mirroring PyTorch eval-mode semantics."""
    inv_std = 1.0 / jnp.sqrt(running_var + eps)
    h = (x - running_mean[None, :, None]) * inv_std[None, :, None]
    h = h * gamma[None, :, None] + beta[None, :, None]
    h = jnp.maximum(h, 0.0)
    K = weight.shape[-1]
    pad = (K - 1) // 2
    out = lax.conv_general_dilated(
        h, weight,
        window_strides=(1,),
        padding=[(pad, pad)],
        dimension_numbers=("NCH", "OIH", "NCH"),
    )
    return out + bias[None, :, None]


if __name__ == "__main__":
    # Small shapes consistent with the module: D_in=4, D_out=8, L=16, N=2, K=3.
    N, D_in, D_out, L, K = 2, 4, 8, 16, 3

    key = jax.random.PRNGKey(0)
    kx, kg, kb, km, kv, kw, kbi = jax.random.split(key, 7)

    x = jax.random.normal(kx, (N, D_in, L), dtype=jnp.float32)

    # Deterministic, non-trivial parameter init (synthetic; not a checkpoint).
    gamma = 1.0 + 0.1 * jax.random.normal(kg, (D_in,), dtype=jnp.float32)
    beta = 0.1 * jax.random.normal(kb, (D_in,), dtype=jnp.float32)
    running_mean = 0.1 * jax.random.normal(km, (D_in,), dtype=jnp.float32)
    running_var = 1.0 + 0.1 * jax.random.uniform(kv, (D_in,), dtype=jnp.float32)
    weight = 0.2 * jax.random.normal(kw, (D_out, D_in, K), dtype=jnp.float32)
    bias = 0.1 * jax.random.normal(kbi, (D_out,), dtype=jnp.float32)

    out = unit_conv(x, gamma, beta, running_mean, running_var, weight, bias)
    out = jax.block_until_ready(out)

    ref = _reference(x, gamma, beta, running_mean, running_var, weight, bias)
    assert out.shape == (N, D_out, L)
    assert jnp.allclose(out, ref, atol=1e-4, rtol=1e-4), "mismatch vs reference"

    print("KERNEL_OK")
</pallas_src>

<mosaic_0001>
module attributes {stable_mosaic.version = 11 : i64} {
  func.func @kernel(%arg0: i32, %arg1: memref<2x64xf32, #tpu.memory_space<vmem>>, %arg2: memref<1x64xf32, #tpu.memory_space<vmem>>, %arg3: memref<1x64xf32, #tpu.memory_space<vmem>>, %arg4: memref<64x128xf32, #tpu.memory_space<vmem>>, %arg5: memref<1x128xf32, #tpu.memory_space<vmem>>, %arg6: memref<2x128xf32, #tpu.memory_space<vmem>>) attributes {dimension_semantics = [#tpu.dimension_semantics<parallel>], iteration_bounds = array<i64: 1>, scalar_prefetch = 0 : i64, scratch_operands = 0 : i64, tpu.core_type = #tpu.core_type<tc>, window_params = [{transform_indices = @transform_0, window_bounds = array<i64: 2, 64>}, {pipeline_mode = #tpu.pipeline_mode<synchronous>, transform_indices = @transform_1, window_bounds = array<i64: 1, 64>}, {pipeline_mode = #tpu.pipeline_mode<synchronous>, transform_indices = @transform_2, window_bounds = array<i64: 1, 64>}, {pipeline_mode = #tpu.pipeline_mode<synchronous>, transform_indices = @transform_3, window_bounds = array<i64: 64, 128>}, {pipeline_mode = #tpu.pipeline_mode<synchronous>, transform_indices = @transform_4, window_bounds = array<i64: 1, 128>}, {transform_indices = @transform_5, window_bounds = array<i64: 2, 128>}]} {
    %c0 = arith.constant 0 : index
    %c0_0 = arith.constant 0 : index
    %0 = vector.load %arg1[%c0, %c0_0] : memref<2x64xf32, #tpu.memory_space<vmem>>, vector<2x64xf32>
    %c0_1 = arith.constant 0 : index
    %c0_2 = arith.constant 0 : index
    %1 = vector.load %arg2[%c0_1, %c0_2] : memref<1x64xf32, #tpu.memory_space<vmem>>, vector<1x64xf32>
    %2 = vector.broadcast %1 : vector<1x64xf32> to vector<2x64xf32>
    %3 = arith.mulf %0, %2 : vector<2x64xf32>
    %c0_3 = arith.constant 0 : index
    %c0_4 = arith.constant 0 : index
    %4 = vector.load %arg3[%c0_3, %c0_4] : memref<1x64xf32, #tpu.memory_space<vmem>>, vector<1x64xf32>
    %5 = vector.broadcast %4 : vector<1x64xf32> to vector<2x64xf32>
    %6 = arith.addf %3, %5 : vector<2x64xf32>
    %cst = arith.constant 0.000000e+00 : f32
    %7 = vector.broadcast %cst : f32 to vector<2x64xf32>
    %8 = arith.maximumf %6, %7 : vector<2x64xf32>
    %c0_5 = arith.constant 0 : index
    %c0_6 = arith.constant 0 : index
    %9 = vector.load %arg4[%c0_5, %c0_6] : memref<64x128xf32, #tpu.memory_space<vmem>>, vector<64x128xf32>
    %cst_7 = arith.constant dense<0.000000e+00> : vector<2x128xf32>
    %10 = tpu.matmul %8, %9, %cst_7 {dimension_numbers = #tpu.dot_dimension_numbers<[1], [0], [0], [1], [0, 0, 1, 1], [], []>} : vector<2x64xf32>, vector<64x128xf32>, vector<2x128xf32> -> vector<2x128xf32>
    %c0_8 = arith.constant 0 : index
    %c0_9 = arith.constant 0 : index
    %11 = vector.load %arg5[%c0_8, %c0_9] : memref<1x128xf32, #tpu.memory_space<vmem>>, vector<1x128xf32>
    %12 = vector.broadcast %11 : vector<1x128xf32> to vector<2x128xf32>
    %13 = arith.addf %10, %12 : vector<2x128xf32>
    %c0_10 = arith.constant 0 : index
    %c0_11 = arith.constant 0 : index
    %14 = vector.load %arg6[%c0_10, %c0_11] : memref<2x128xf32, #tpu.memory_space<vmem>>, vector<2x128xf32>
    tpu.vector_store %arg6[%c0_10, %c0_11], %13 {strides = array<i32>} : memref<2x128xf32, #tpu.memory_space<vmem>>, vector<2x128xf32>,
    return
  }
  func.func @transform_0(%arg0: i32) -> (i32, i32) {
    %c0_i32 = arith.constant 0 : i32
    %c0_i32_0 = arith.constant 0 : i32
    return %arg0, %c0_i32 : i32, i32
  }
  func.func @transform_1(%arg0: i32) -> (i32, i32) {
    %c0_i32 = arith.constant 0 : i32
    %c0_i32_0 = arith.constant 0 : i32
    %c0_i32_1 = arith.constant 0 : i32
    return %c0_i32, %c0_i32_0 : i32, i32
  }
  func.func @transform_2(%arg0: i32) -> (i32, i32) {
    %c0_i32 = arith.constant 0 : i32
    %c0_i32_0 = arith.constant 0 : i32
    %c0_i32_1 = arith.constant 0 : i32
    return %c0_i32, %c0_i32_0 : i32, i32
  }
  func.func @transform_3(%arg0: i32) -> (i32, i32) {
    %c0_i32 = arith.constant 0 : i32
    %c0_i32_0 = arith.constant 0 : i32
    %c0_i32_1 = arith.constant 0 : i32
    return %c0_i32, %c0_i32_0 : i32, i32
  }
  func.func @transform_4(%arg0: i32) -> (i32, i32) {
    %c0_i32 = arith.constant 0 : i32
    %c0_i32_0 = arith.constant 0 : i32
    %c0_i32_1 = arith.constant 0 : i32
    return %c0_i32, %c0_i32_0 : i32, i32
  }
  func.func @transform_5(%arg0: i32) -> (i32, i32) {
    %c0_i32 = arith.constant 0 : i32
    %c0_i32_0 = arith.constant 0 : i32
    return %arg0, %c0_i32 : i32, i32
  }
}

</mosaic_0001>

<llo_original>
// kernel: tpu_custom_call.1
$region0: #{tpu_custom_call.1}
  #allocation0 [shape = 'u32[]', space=smem, size = 0x4, offset = 0x4, fixed_abs, tag = 'smem constant byte address 0x4 - core index']
  #allocation1 [shape = 'u32[144,128]{1,0:T(1,128)}', space=vmem, size = 0x12000, scoped, tag = 'internal scratch']
  %s0 = inlined_call_operand.hbm [shape: f32[2,64], index: 0, kind: input, shape index: {}]
  %s1 = inlined_call_operand.vmem [shape: f32[1,64], index: 1, kind: input, shape index: {}]
  %s2 = inlined_call_operand.vmem [shape: f32[1,64], index: 2, kind: input, shape index: {}]
  %s3 = inlined_call_operand.hbm [shape: f32[64,128], index: 3, kind: input, shape index: {}]
  %s4 = inlined_call_operand.vmem [shape: f32[1,128], index: 4, kind: input, shape index: {}]
  %s5 = inlined_call_operand.hbm [shape: f32[2,128], index: 5, kind: output, shape index: {}]
  %s6 = sld [smem:[#allocation0]]
  $region38: #{tpu_custom_call.1} parent=0
    _
  %s8 = ssub.s32 1, %s6
  %s9 = scalar_select 0, %s8, %s6
  $region1: #{tpu_custom_call.1} parent=0
    #allocation2 [shape = 'u8[1024]{0}', space=vmem, size = 0x400, scoped, tag = 'input window, operand 0, single buffered']
    #allocation3 [shape = 's32[1]{0}', space=sflag, size = 0x4, scoped, tag = 'scoped memory for tpu_custom_call.1']
    #allocation4 [shape = 's32[1]{0}', space=sflag, size = 0x4, scoped, tag = 'scoped memory for tpu_custom_call.1']
    #allocation5 [shape = 'u8[32768]{0}', space=vmem, size = 0x8000, scoped, tag = 'input window, operand 3, single buffered']
    #allocation6 [shape = 's32[1]{0}', space=sflag, size = 0x4, scoped, tag = 'scoped memory for tpu_custom_call.1']
    #allocation7 [shape = 'u8[1024]{0}', space=vmem, size = 0x400, scoped, tag = 'output window, operand 0, single buffered']
    %10 = vsyncpa [#allocation3], 0
    %11 = vsyncpa [#allocation6], 0
    %12 = vsyncpa [#allocation4], 0
    // Predicated region
    $region2: #{tpu_custom_call.1} parent=1 // pred_check
      _
    $region3: #{tpu_custom_call.1} parent=1 // pred_check_branch
      %14 = sbr.rel (0) target = $region5
    $region4: #{tpu_custom_call.1} parent=1 // pred_region
      %s16 = ssub.s32 32, 32
      %17 = vsyncadd [#allocation3], %s16
      %s19 = sshll.u32 [#allocation2], 4
      %s20 = int_to_ptr.vmem [resolvable:$true] %s19
      %22 = dma.hbm_to_vmem [thread:$0]  %s0, 32, %s20, [#allocation3]
    $region5: #{tpu_custom_call.1} parent=1 // pred_fallthru
      _
    // Predicated region
    $region6: #{tpu_custom_call.1} parent=1 // pred_check
      _
    $region7: #{tpu_custom_call.1} parent=1 // pred_check_branch
      %24 = sbr.rel (0) target = $region9
    $region8: #{tpu_custom_call.1} parent=1 // pred_region
      _
    $region9: #{tpu_custom_call.1} parent=1 // pred_fallthru
      _
    // Predicated region
    $region10: #{tpu_custom_call.1} parent=1 // pred_check
      _
    $region11: #{tpu_custom_call.1} parent=1 // pred_check_branch
      %26 = sbr.rel (0) target = $region13
    $region12: #{tpu_custom_call.1} parent=1 // pred_region
      _
    $region13: #{tpu_custom_call.1} parent=1 // pred_fallthru
      _
    // Predicated region
    $region14: #{tpu_custom_call.1} parent=1 // pred_check
      _
    $region15: #{tpu_custom_call.1} parent=1 // pred_check_branch
      %28 = sbr.rel (0) target = $region17
    $region16: #{tpu_custom_call.1} parent=1 // pred_region
      %s30 = ssub.s32 1024, 1024
      %31 = vsyncadd [#allocation6], %s30
      %s32 = sshll.u32 [#allocation5], 4
      %s33 = int_to_ptr.vmem [resolvable:$true] %s32
      %38 = dma.hbm_to_vmem [thread:$0]  %s3, 1024, %s33, [#allocation6], 128, 128, 8
    $region17: #{tpu_custom_call.1} parent=1 // pred_fallthru
      _
    // Predicated region
    $region18: #{tpu_custom_call.1} parent=1 // pred_check
      _
    $region19: #{tpu_custom_call.1} parent=1 // pred_check_branch
      %40 = sbr.rel (0) target = $region21
    $region20: #{tpu_custom_call.1} parent=1 // pred_region
      _
    $region21: #{tpu_custom_call.1} parent=1 // pred_fallthru
      _
    // Predicated region
    $region22: #{tpu_custom_call.1} parent=1 // pred_check
      _
    $region23: #{tpu_custom_call.1} parent=1 // pred_check_branch
      %42 = sbr.rel (0) target = $region25
    $region24: #{tpu_custom_call.1} parent=1 // pred_region
      %43 = dma.done [#allocation3], 32
    $region25: #{tpu_custom_call.1} parent=1 // pred_fallthru
      _
    // Predicated region
    $region26: #{tpu_custom_call.1} parent=1 // pred_check
      _
    $region27: #{tpu_custom_call.1} parent=1 // pred_check_branch
      %45 = sbr.rel (0) target = $region29
    $region28: #{tpu_custom_call.1} parent=1 // pred_region
      %46 = dma.done [#allocation6], 1024
    $region29: #{tpu_custom_call.1} parent=1 // pred_fallthru
      _
    %v47 = vld [vmem:[#allocation2] sm:$0x3]
    %v48 = vld [vmem:[%s1] sm:$0x1]
    %v50 = vlaneseq
    %v51 = vshrl.u32 %v50, 7
    %v52 = vsub.s32 0, %v51
    %v53 = vrot.slane %v48, %v52
    %v55 = vmul.f32 %v47, %v53
    %v56 = vld [vmem:[%s2] sm:$0x1]
    %v58 = vlaneseq
    %v59 = vshrl.u32 %v58, 7
    %v60 = vsub.s32 0, %v59
    %v61 = vrot.slane %v56, %v60
    %v63 = vadd.f32 %v55, %v61
    %v64 = vmax.f32 %v63, 0.0
    %v65 = vld [vmem:[#allocation5] sm:$0xff]
    %v66 = vld [vmem:[#allocation5 + $0x8] sm:$0xff]
    %v67 = vld [vmem:[#allocation5 + $0x10] sm:$0xff]
    %v68 = vld [vmem:[#allocation5 + $0x18] sm:$0xff]
    %v69 = vld [vmem:[#allocation5 + $0x20] sm:$0xff]
    %v70 = vld [vmem:[#allocation5 + $0x28] sm:$0xff]
    %v71 = vld [vmem:[#allocation5 + $0x30] sm:$0xff]
    %v72 = vld [vmem:[#allocation5 + $0x38] sm:$0xff]
    %v73 = vld [vmem:[%s4] sm:$0x1]
    %v75 = vlaneseq
    %v76 = vshrl.u32 %v75, 7
    %v77 = vsub.s32 0, %v76
    %v78 = vrot.slane %v73, %v77
    %vm80 = vcmask 523264
    %v82 = vsel %vm80, %v64, 0
    %84 = vmatprep.subr.mxu0 0.0
    %85 = vmatpush1.msra.mxu0 %v65
    %86 = vmatprep.subr.mxu0 0.0
    %87 = vmatpush1.msra.mxu0 %v66
    %88 = vmatprep.subr.mxu0 0.0
    %89 = vmatpush1.msra.mxu0 %v67
    %90 = vmatprep.subr.mxu0 0.0
    %91 = vmatpush1.msra.mxu0 %v68
    %92 = vmatprep.subr.mxu0 0.0
    %93 = vmatpush1.msra.mxu0 %v69
    %94 = vmatprep.subr.mxu0 0.0
    %95 = vmatpush1.msra.mxu0 %v70
    %96 = vmatprep.subr.mxu0 0.0
    %97 = vmatpush1.msra.mxu0 %v71
    %98 = vmatprep.subr.mxu0 0.0
    %99 = vmatpush1.msra.mxu0 %v72
    %100 = vmatprep.subr.mxu0 0.0
    %101 = vmatpush1.msra.mxu0 0.0
    %102 = vmatprep.subr.mxu0 0.0
    %103 = vmatpush1.msra.mxu0 0.0
    %104 = vmatprep.subr.mxu0 0.0
    %105 = vmatpush1.msra.mxu0 0.0
    %106 = vmatprep.subr.mxu0 0.0
    %107 = vmatpush1.msra.mxu0 0.0
    %108 = vmatprep.subr.mxu0 0.0
    %109 = vmatpush1.msra.mxu0 0.0
    %110 = vmatprep.subr.mxu0 0.0
    %111 = vmatpush1.msra.mxu0 0.0
    %112 = vmatprep.subr.mxu0 0.0
    %113 = vmatpush1.msra.mxu0 0.0
    %114 = vmatprep.subr.mxu0 0.0
    %115 = vmatpush1.msra.mxu0 0.0
    %116 = vmatprep.subr.mxu0 0.0
    %117 = vmatpush1.msra.mxu0 0.0
    %118 = vmatprep.subr.mxu0 0.0
    %119 = vmatpush1.msra.mxu0 0.0
    %120 = vmatprep.subr.mxu0 0.0
    %121 = vmatpush1.msra.mxu0 0.0
    %122 = vmatprep.subr.mxu0 0.0
    %123 = vmatpush1.msra.mxu0 0.0
    %124 = vmatprep.subr.mxu0 0.0
    %125 = vmatpush1.msra.mxu0 0.0
    %126 = vmatprep.subr.mxu0 0.0
    %127 = vmatpush1.msra.mxu0 0.0
    %128 = vmatprep.subr.mxu0 0.0
    %129 = vmatpush1.msra.mxu0 0.0
    %130 = vmatprep.subr.mxu0 0.0
    %131 = vmatpush1.msra.mxu0 0.0
    %132 = vmatprep.subr.mxu0 0.0
    %133 = vmatpush1.msra.mxu0 0.0
    %134 = vmatprep.subr.mxu0 0.0
    %135 = vmatpush1.msra.mxu0 0.0
    %136 = vmatprep.subr.mxu0 0.0
    %137 = vmatpush1.msra.mxu0 0.0
    %138 = vmatprep.subr.mxu0 0.0
    %139 = vmatpush1.msra.mxu0 0.0
    %140 = vmatprep.subr.mxu0 0.0
    %141 = vmatpush1.msra.mxu0 0.0
    %142 = vmatprep.subr.mxu0 0.0
    %143 = vmatpush1.msra.mxu0 0.0
    %144 = vmatprep.subr.mxu0 0.0
    %145 = vmatpush1.msra.mxu0 0.0
    %146 = vmatprep.subr.mxu0 0.0
    %147 = vmatpush1.msra.mxu0 0.0
    %148 = vmatprep.mubr.f32.mxu0 0.0
    %149 = vmatmul.mubr.f32.gmra.mrb[0].mxu0 %v82
    %v150 = vpop.f32.mrb[0].mxu0
    %v151 = vadd.f32 %v78, %v150
    %v152 = vpop.f32.mrb[0].mxu0
    %153 = vdwg.mxu0
    %154 = vst [vmem:[#allocation7] sm:$0x3] %v151
    // Predicated region
    $region30: #{tpu_custom_call.1} parent=1 // pred_check
      _
    $region31: #{tpu_custom_call.1} parent=1 // pred_check_branch
      %156 = sbr.rel (0) target = $region33
    $region32: #{tpu_custom_call.1} parent=1 // pred_region
      %s158 = ssub.s32 32, 32
      %159 = vsyncadd [#allocation4], %s158
      %s161 = sshll.u32 [#allocation7], 4
      %s162 = int_to_ptr.vmem [resolvable:$true] %s161
      %164 = dma.vmem_to_hbm [thread:$0]  %s162, 32, %s5, [#allocation4]
    $region33: #{tpu_custom_call.1} parent=1 // pred_fallthru
      _
    // Predicated region
    $region34: #{tpu_custom_call.1} parent=1 // pred_check
      _
    $region35: #{tpu_custom_call.1} parent=1 // pred_check_branch
      %166 = sbr.rel (0) target = $region37
    $region36: #{tpu_custom_call.1} parent=1 // pred_region
      %167 = dma.done [#allocation4], 32
    $region37: #{tpu_custom_call.1} parent=1 // pred_fallthru
      _
    %168 = vsyncpa [#allocation3], 1
    %169 = vsyncpa [#allocation6], 1
    %170 = vsyncpa [#allocation4], 1

</llo_original>
